<compile_context>
chip_gen: v5e
topology: v5e:2x2
jax: 0.10.0
libtpu: 0.0.40
codegen_flags: <defaults>
</compile_context>

<pallas_src>
import math
from functools import partial

import jax
import jax.numpy as jnp
import numpy as np
from jax.experimental import pallas as pl
from jax.experimental.pallas import tpu as pltpu


def _phase_mask_kernel(c_ref, s_ref, xr_ref, xi_ref, or_ref, oi_ref):
    """(xr + i*xi) * (c + i*s), (c, s) = precomputed, already-masked phase mask.

    c_ref, s_ref:   (rt, L) f32      -- cos/sin of quantized phase, zero outside window
    xr_ref, xi_ref: (bt, rt, L) f32  -- real / imaginary planes of the input field
    or_ref, oi_ref: (bt, rt, L) f32  -- real / imaginary planes of the output field
    """
    c = c_ref[...]
    s = s_ref[...]
    xr = xr_ref[...]
    xi = xi_ref[...]
    # Single fused body -> dense back-to-back store stream (matters for v5e's 1 vst slot).
    or_ref[...] = xr * c - xi * s
    oi_ref[...] = xr * s + xi * c


def _dorefa_phase_mask(w_p, whole_dim, phase_dim):
    """Batch-invariant mask: cos/sin of dorefa_w(w_p, 8) * pi, zero-padded to (W, W)."""
    W, P = whole_dim, phase_dim
    pad = (W - P) // 2
    tw = jnp.tanh(w_p.reshape(P, P).astype(jnp.float32))
    # NOTE: like the PyTorch reference, this is NaN if w_p is identically zero
    # (no clamp, intentional parity).
    max_w = jnp.max(jnp.abs(tw))
    scale = 2.0 ** 8 - 1.0                                # nbit_w = 8
    q = jnp.round((tw / (2.0 * max_w) + 0.5) * scale) / scale
    phase = (1.999 * q - 1.0) * math.pi
    # F.pad of the complex mask pads with 0+0j -> pad cos/sin planes with zeros.
    c = jnp.pad(jnp.cos(phase), ((pad, pad), (pad, pad)))
    s = jnp.pad(jnp.sin(phase), ((pad, pad), (pad, pad)))
    return c, s


def _plane_layout(W):
    """Reshape a (W, W) plane to (R, L) with L a multiple of 128 (lane-dense stores)."""
    WW = W * W
    for L in (1024, 512, 256, 128):
        if WW % L == 0 and (WW // L) % 8 == 0:
            return WW // L, L
    return W, W                                           # fallback: full-extent dims


def _choose_blocks(B, R, L, *, target_bytes=2 << 20, min_steps=4):
    """Pick (bt, rt): batch items and rows per grid step.

    Targets ~2 MiB per field-plane block, >= min_steps steps for DMA/compute
    overlap, and an even total step count (v7x splits parallel axes over 2 TCs).
    Ragged boundary blocks (via pl.cdiv grids) handle non-dividing B / R.
    """
    row_bytes = L * 4
    plane_bytes = R * row_bytes

    # Rows per block: second-to-last block dim must be a multiple of 8 or the full R.
    if plane_bytes <= target_bytes or R < 16:
        rt = R
    else:
        rt = max(8, min(R, (target_bytes // row_bytes) // 8 * 8))
    n_r = pl.cdiv(R, rt)

    # Batch items per block, filling up to the per-plane target.
    block_plane = rt * row_bytes
    bt = int(max(1, min(B, target_bytes // block_plane)))

    def total_steps(bt_):
        return n_r * pl.cdiv(B, bt_)

    # Keep enough steps in flight for pipelining (prologue/epilogue overlap).
    while bt > 1 and total_steps(bt) < min_steps:
        bt = max(1, bt // 2)

    # If batch splitting alone can't provide enough steps, split rows further, but keep
    # each field-plane block >= ~256 KiB so the ~0.35 us fixed step cost stays hidden.
    while (bt == 1 and total_steps(1) < min_steps
           and rt > 8 and rt % 2 == 0 and (rt // 2) % 8 == 0
           and (rt // 2) * row_bytes >= (256 << 10)):
        rt //= 2
        n_r = pl.cdiv(R, rt)

    # Best-effort even total step count (2-TensorCore balance on v7x).
    if total_steps(bt) % 2 == 1 and B > 1:
        best = None
        for cand in range(bt - 1, max(0, bt // 2), -1):
            if (n_r * pl.cdiv(B, cand)) % 2 == 0:
                if B % cand == 0:
                    best = cand
                    break
                if best is None:
                    best = cand
        if best is not None:
            bt = best

    return bt, rt


def phase_mask_reference(input_field, w_p, whole_dim, phase_dim):
    """Pure-JAX reference (mirrors the PyTorch forward exactly)."""
    W, P = whole_dim, phase_dim
    pad = (W - P) // 2
    tw = jnp.tanh(w_p)                                    # (1, P, P)
    max_w = jnp.max(jnp.abs(tw))
    scale = 2.0 ** 8 - 1.0
    q = jnp.round((tw / (2.0 * max_w) + 0.5) * scale) / scale
    phase = (1.999 * q - 1.0) * math.pi
    mask = jax.lax.complex(jnp.cos(phase), jnp.sin(phase))
    mask_whole = jnp.pad(mask, ((0, 0), (pad, pad), (pad, pad)))
    return input_field * mask_whole


@partial(jax.jit, static_argnames=("whole_dim", "phase_dim", "split_output", "force_pallas"))
def phase_mask_forward(input_field, w_p, whole_dim, phase_dim, *,
                       split_output=False, force_pallas=False):
    """Pallas implementation of PhaseMask.forward.

    input_field: (B, whole_dim, whole_dim) complex64
    w_p:         (1, phase_dim, phase_dim) float32 parameter
    returns:     complex64 field (default), or (re, im) f32 planes if split_output.
    """
    B = input_field.shape[0]
    W = whole_dim

    # Small-problem fast path: one fused XLA complex multiply beats any Pallas launch.
    if not force_pallas and B * W * W * 8 < (2 << 20):
        out = phase_mask_reference(input_field, w_p, whole_dim, phase_dim)
        if split_output:
            return jnp.real(out), jnp.imag(out)
        return out

    # Mask hoisted out of the kernel: tiny one-time (P*P) transcendental work.
    c, s = _dorefa_phase_mask(w_p, whole_dim, phase_dim)  # (W, W) each

    R, L = _plane_layout(W)
    c = c.reshape(R, L)
    s = s.reshape(R, L)

    # Real/imag split: with allow_input_fusion below, XLA may fuse these elementwise
    # producers into the pallas operand reads instead of materializing them in HBM.
    # TODO(synk): XLA disallows bitcasting complex64 <-> float32, so a zero-copy view
    # of the complex field is not expressible; the split itself stays in the wrapper.
    xr = jnp.real(input_field).astype(jnp.float32).reshape(B, R, L)
    xi = jnp.imag(input_field).astype(jnp.float32).reshape(B, R, L)

    bt, rt = _choose_blocks(B, R, L)
    n_r = pl.cdiv(R, rt)
    n_b = pl.cdiv(B, bt)
    grid = (n_r, n_b)                                     # batch innermost -> mask block
                                                          # only re-fetched when r changes

    mask_spec = pl.BlockSpec((rt, L), lambda r, b: (r, 0))
    field_spec = pl.BlockSpec((bt, rt, L), lambda r, b: (b, r, 0))

    out_re, out_im = pl.pallas_call(
        _phase_mask_kernel,
        grid=grid,
        in_specs=[mask_spec, mask_spec, field_spec, field_spec],
        out_specs=[field_spec, field_spec],
        out_shape=[
            jax.ShapeDtypeStruct((B, R, L), jnp.float32),
            jax.ShapeDtypeStruct((B, R, L), jnp.float32),
        ],
        compiler_params=pltpu.CompilerParams(
            dimension_semantics=("parallel", "parallel"),
            allow_input_fusion=[False, False, True, True],   # fuse the re/im split
            vmem_limit_bytes=32 * 1024 * 1024,                # blocks bounded to ~24 MiB
        ),
    )(c, s, xr, xi)

    out_re = out_re.reshape(B, W, W)
    out_im = out_im.reshape(B, W, W)
    if split_output:
        # Preferred for chaining into the next optical op: avoids the complex
        # recombine HBM pass entirely.
        return out_re, out_im
    return jax.lax.complex(out_re, out_im)


if __name__ == "__main__":
    whole_dim = 64
    phase_dim = 32

    key = jax.random.PRNGKey(0)
    k_w, k_f = jax.random.split(key)

    # Deterministic init matching nn.init.kaiming_uniform_(w_p, a=sqrt(5)):
    # shape (1, P, P) -> fan_in = P*P, gain = sqrt(2/(1+5)) -> bound = 1/P.
    bound = 1.0 / phase_dim
    w_p = jax.random.uniform(k_w, (1, phase_dim, phase_dim),
                             jnp.float32, -bound, bound)

    def make_field(batch):
        kr, ki = jax.random.split(jax.random.fold_in(k_f, batch))
        return jax.lax.complex(
            jax.random.normal(kr, (batch, whole_dim, whole_dim), jnp.float32),
            jax.random.normal(ki, (batch, whole_dim, whole_dim), jnp.float32))

    # 1) Pallas path (forced) at the small test size, complex output (module parity).
    x4 = make_field(4)
    out = jax.block_until_ready(
        phase_mask_forward(x4, w_p, whole_dim, phase_dim, force_pallas=True))
    ref = phase_mask_reference(x4, w_p, whole_dim, phase_dim)
    np.testing.assert_allclose(np.asarray(out), np.asarray(ref), rtol=1e-5, atol=1e-5)

    # 2) Multi-step grid + split-plane output path (no recombine pass).
    x16 = make_field(16)
    o_re, o_im = phase_mask_forward(x16, w_p, whole_dim, phase_dim,
                                    force_pallas=True, split_output=True)
    jax.block_until_ready((o_re, o_im))
    ref16 = np.asarray(phase_mask_reference(x16, w_p, whole_dim, phase_dim))
    np.testing.assert_allclose(np.asarray(o_re), ref16.real, rtol=1e-5, atol=1e-5)
    np.testing.assert_allclose(np.asarray(o_im), ref16.imag, rtol=1e-5, atol=1e-5)

    # 3) Auto path: this size is below the threshold -> fused-XLA fast path.
    out_auto = jax.block_until_ready(phase_mask_forward(x4, w_p, whole_dim, phase_dim))
    np.testing.assert_allclose(np.asarray(out_auto), np.asarray(ref),
                               rtol=1e-5, atol=1e-5)

    print("KERNEL_OK")
</pallas_src>

<mosaic_0001>
module attributes {stable_mosaic.version = 11 : i64} {
  func.func @_phase_mask_kernel(%arg0: i32, %arg1: i32, %arg2: memref<8x512xf32, #tpu.memory_space<vmem>>, %arg3: memref<8x512xf32, #tpu.memory_space<vmem>>, %arg4: memref<1x8x512xf32, #tpu.memory_space<vmem>>, %arg5: memref<1x8x512xf32, #tpu.memory_space<vmem>>, %arg6: memref<1x8x512xf32, #tpu.memory_space<vmem>>, %arg7: memref<1x8x512xf32, #tpu.memory_space<vmem>>) attributes {dimension_semantics = [#tpu.dimension_semantics<parallel>, #tpu.dimension_semantics<parallel>], iteration_bounds = array<i64: 1, 4>, scalar_prefetch = 0 : i64, scratch_operands = 0 : i64, tpu.core_type = #tpu.core_type<tc>, window_params = [{transform_indices = @transform_0, window_bounds = array<i64: 8, 512>}, {transform_indices = @transform_1, window_bounds = array<i64: 8, 512>}, {transform_indices = @transform_2, window_bounds = array<i64: 1, 8, 512>}, {transform_indices = @transform_3, window_bounds = array<i64: 1, 8, 512>}, {transform_indices = @transform_4, window_bounds = array<i64: 1, 8, 512>}, {transform_indices = @transform_5, window_bounds = array<i64: 1, 8, 512>}]} {
    %c0 = arith.constant 0 : index
    %c0_0 = arith.constant 0 : index
    %0 = vector.load %arg2[%c0, %c0_0] : memref<8x512xf32, #tpu.memory_space<vmem>>, vector<8x512xf32>
    %c0_1 = arith.constant 0 : index
    %c0_2 = arith.constant 0 : index
    %1 = vector.load %arg3[%c0_1, %c0_2] : memref<8x512xf32, #tpu.memory_space<vmem>>, vector<8x512xf32>
    %c0_3 = arith.constant 0 : index
    %c0_4 = arith.constant 0 : index
    %c0_5 = arith.constant 0 : index
    %2 = vector.load %arg4[%c0_3, %c0_4, %c0_5] : memref<1x8x512xf32, #tpu.memory_space<vmem>>, vector<1x8x512xf32>
    %c0_6 = arith.constant 0 : index
    %c0_7 = arith.constant 0 : index
    %c0_8 = arith.constant 0 : index
    %3 = vector.load %arg5[%c0_6, %c0_7, %c0_8] : memref<1x8x512xf32, #tpu.memory_space<vmem>>, vector<1x8x512xf32>
    %4 = vector.shape_cast %0 : vector<8x512xf32> to vector<1x8x512xf32>
    %5 = arith.mulf %2, %4 : vector<1x8x512xf32>
    %6 = vector.shape_cast %1 : vector<8x512xf32> to vector<1x8x512xf32>
    %7 = arith.mulf %3, %6 : vector<1x8x512xf32>
    %8 = arith.subf %5, %7 : vector<1x8x512xf32>
    %c0_9 = arith.constant 0 : index
    %c0_10 = arith.constant 0 : index
    %c0_11 = arith.constant 0 : index
    %9 = vector.load %arg6[%c0_9, %c0_10, %c0_11] : memref<1x8x512xf32, #tpu.memory_space<vmem>>, vector<1x8x512xf32>
    tpu.vector_store %arg6[%c0_9, %c0_10, %c0_11], %8 {strides = array<i32>} : memref<1x8x512xf32, #tpu.memory_space<vmem>>, vector<1x8x512xf32>,
    %10 = vector.shape_cast %1 : vector<8x512xf32> to vector<1x8x512xf32>
    %11 = arith.mulf %2, %10 : vector<1x8x512xf32>
    %12 = vector.shape_cast %0 : vector<8x512xf32> to vector<1x8x512xf32>
    %13 = arith.mulf %3, %12 : vector<1x8x512xf32>
    %14 = arith.addf %11, %13 : vector<1x8x512xf32>
    %c0_12 = arith.constant 0 : index
    %c0_13 = arith.constant 0 : index
    %c0_14 = arith.constant 0 : index
    %15 = vector.load %arg7[%c0_12, %c0_13, %c0_14] : memref<1x8x512xf32, #tpu.memory_space<vmem>>, vector<1x8x512xf32>
    tpu.vector_store %arg7[%c0_12, %c0_13, %c0_14], %14 {strides = array<i32>} : memref<1x8x512xf32, #tpu.memory_space<vmem>>, vector<1x8x512xf32>,
    return
  }
  func.func @transform_0(%arg0: i32, %arg1: i32) -> (i32, i32) {
    %c0_i32 = arith.constant 0 : i32
    %c0_i32_0 = arith.constant 0 : i32
    return %arg0, %c0_i32 : i32, i32
  }
  func.func @transform_1(%arg0: i32, %arg1: i32) -> (i32, i32) {
    %c0_i32 = arith.constant 0 : i32
    %c0_i32_0 = arith.constant 0 : i32
    return %arg0, %c0_i32 : i32, i32
  }
  func.func @transform_2(%arg0: i32, %arg1: i32) -> (i32, i32, i32) {
    %c0_i32 = arith.constant 0 : i32
    %c0_i32_0 = arith.constant 0 : i32
    return %arg1, %arg0, %c0_i32 : i32, i32, i32
  }
  func.func @transform_3(%arg0: i32, %arg1: i32) -> (i32, i32, i32) {
    %c0_i32 = arith.constant 0 : i32
    %c0_i32_0 = arith.constant 0 : i32
    return %arg1, %arg0, %c0_i32 : i32, i32, i32
  }
  func.func @transform_4(%arg0: i32, %arg1: i32) -> (i32, i32, i32) {
    %c0_i32 = arith.constant 0 : i32
    %c0_i32_0 = arith.constant 0 : i32
    return %arg1, %arg0, %c0_i32 : i32, i32, i32
  }
  func.func @transform_5(%arg0: i32, %arg1: i32) -> (i32, i32, i32) {
    %c0_i32 = arith.constant 0 : i32
    %c0_i32_0 = arith.constant 0 : i32
    return %arg1, %arg0, %c0_i32 : i32, i32, i32
  }
}

</mosaic_0001>

<llo_original>
// kernel: custom-call.1
$region0: #{custom-call.1}
  %s0 = inlined_call_operand.hbm [shape: c64[4,64,64], index: 0, kind: input, shape index: {}]
  %s1 = inlined_call_operand.vmem [shape: f32[4,64,64], index: 1, kind: output, shape index: {}]
  %s2 = scalar_lea.hbm %s0, 256
  $region1: #{custom-call.1} parent=0
    #allocation0 [shape = 's32[1]{0}', space=sflag, size = 0x4, scoped, tag = 'scoped memory for custom-call.1']
    %3 = vsyncpa [#allocation0], 0
    %s5 = sshll.u32 %s2, 4
    %s6 = int_to_ptr.hbm [resolvable:$true] %s5
    %s7 = sshll.u32 %s1, 4
    %s8 = int_to_ptr.vmem [resolvable:$true] %s7
    %10 = dma.hbm_to_vmem [thread:$0]  %s6, 4096, %s8, [#allocation0]
    %12 = dma.done [#allocation0], 4096
    %13 = vsyncpa [#allocation0], 1

// kernel: custom-call
$region0: #{custom-call}
  %s0 = inlined_call_operand.hbm [shape: c64[4,64,64], index: 0, kind: input, shape index: {}]
  %s1 = inlined_call_operand.vmem [shape: f32[4,64,64], index: 1, kind: output, shape index: {}]
  $region1: #{custom-call} parent=0
    #allocation0 [shape = 's32[1]{0}', space=sflag, size = 0x4, scoped, tag = 'scoped memory for custom-call']
    %2 = vsyncpa [#allocation0], 0
    %s4 = sshll.u32 %s0, 4
    %s5 = int_to_ptr.hbm [resolvable:$true] %s4
    %s6 = sshll.u32 %s1, 4
    %s7 = int_to_ptr.vmem [resolvable:$true] %s6
    %9 = dma.hbm_to_vmem [thread:$0]  %s5, 4096, %s7, [#allocation0]
    %11 = dma.done [#allocation0], 4096
    %12 = vsyncpa [#allocation0], 1

// kernel: custom-call.2
$region0: #{custom-call.2}
  %s0 = inlined_call_operand.vmem [shape: f32[4,64,64], index: 0, kind: input, shape index: {}]
  %s1 = inlined_call_operand.vmem [shape: f32[4,64,64], index: 1, kind: input, shape index: {}]
  %s2 = inlined_call_operand.hbm [shape: c64[4,64,64], index: 2, kind: output, shape index: {}]
  %s3 = scalar_lea.hbm %s2, 256
  $region1: #{custom-call.2} parent=0
    #allocation0 [shape = 's32[1]{0}', space=sflag, size = 0x4, scoped, tag = 'scoped memory for custom-call.2']
    %4 = vsyncpa [#allocation0], 0
    %s6 = sshll.u32 %s0, 4
    %s7 = int_to_ptr.vmem [resolvable:$true] %s6
    %s8 = sshll.u32 %s2, 4
    %s9 = int_to_ptr.hbm [resolvable:$true] %s8
    %11 = dma.vmem_to_hbm [thread:$0]  %s7, 4096, %s9, [#allocation0]
    %13 = dma.done [#allocation0], 4096
    %14 = vsyncpa [#allocation0], 1
  $region2: #{custom-call.2} parent=0
    #allocation1 [shape = 's32[1]{0}', space=sflag, size = 0x4, scoped, tag = 'scoped memory for custom-call.2']
    %15 = vsyncpa [#allocation1], 0
    %s17 = sshll.u32 %s1, 4
    %s18 = int_to_ptr.vmem [resolvable:$true] %s17
    %s19 = sshll.u32 %s3, 4
    %s20 = int_to_ptr.hbm [resolvable:$true] %s19
    %22 = dma.vmem_to_hbm [thread:$0]  %s18, 4096, %s20, [#allocation1]
    %24 = dma.done [#allocation1], 4096
    %25 = vsyncpa [#allocation1], 1

// kernel: phase_mask_forward.1
$region0: #{phase_mask_forward.1}
  #allocation0 [shape = 'u32[]', space=smem, size = 0x4, offset = 0x4, fixed_abs, tag = 'smem constant byte address 0x4 - core index']
  #allocation1 [shape = 'u32[72,128]{1,0:T(1,128)}', space=vmem, size = 0x9000, scoped, tag = 'internal scratch']
  %s0 = inlined_call_operand.vmem [shape: f32[8,512], index: 0, kind: input, shape index: {}]
  %s1 = inlined_call_operand.vmem [shape: f32[8,512], index: 1, kind: input, shape index: {}]
  %s2 = inlined_call_operand.vmem [shape: f32[4,8,512], index: 2, kind: input, shape index: {}]
  %s3 = inlined_call_operand.vmem [shape: f32[4,8,512], index: 3, kind: input, shape index: {}]
  %s4 = inlined_call_operand.vmem [shape: f32[4,8,512], index: 4, kind: output, shape index: {0}]
  %s5 = inlined_call_operand.vmem [shape: f32[4,8,512], index: 5, kind: output, shape index: {1}]
  %6 = xla_tuple %s4, %s5
  %s7 = sld [smem:[#allocation0]]
  $region57: #{phase_mask_forward.1} parent=0
    _
  %s9 = ssub.s32 1, %s7
  %s10 = scalar_select 0, %s9, %s7
  loop: start=0, step=1, limit=6
  $region2: #{phase_mask_forward.1} parent=0 // loop_pre_header
    _
  $region3: #{phase_mask_forward.1} parent=0 // loop_header
    %s12 = sphi 0, %s16
    %p13 = scmp.ge.s32.totalorder %s12, 6
    %s19 = sphi 0, %s31
    %s20 = sphi 0, %s27
    %s21 = sphi 0, %s19
    %s22 = sphi 0, %s20
    %s23 = sphi 0, %s21
    %s24 = sphi 0, %s22
    %s34 = sphi 0, %s36
    %s37 = sphi 0, %s34
    %s38 = sphi 0, %s37
    %s54 = sphi 0, %s38
    %s60 = sphi 0, %s62
    %s63 = sphi 0, %s60
    %s64 = sphi 0, %s63
    %s80 = sphi 0, %s64
    %s88 = sphi 0, %s90
    %s91 = sphi 0, %s88
    %s92 = sphi 0, %s91
    %s108 = sphi 0, %s92
    %s116 = sphi 0, %s118
    %s119 = sphi 0, %s116
    %s120 = sphi 0, %s119
    %s136 = sphi 0, %s120
    %s144 = sphi 0, %s146
    %s147 = sphi 0, %s144
    %s148 = sphi 0, %s147
    %s164 = sphi 0, %s148
    %s172 = sphi 0, %s174
    %s175 = sphi 0, %s172
    %s176 = sphi 0, %s175
    %s192 = sphi 0, %s176
  $region4: #{phase_mask_forward.1} parent=0 // loop_header_branch
    %15 = sbr.rel (%p13) target = $region8
  $region5: #{phase_mask_forward.1} parent=0 // loop_body
    %s17 = ssub.s32 %s12, 1
    %s18 = ssub.s32 %s12, 2
    %s25 = sadd.s32 1, %s20
    %p26 = scmp.ge.s32.totalorder %s25, 4
    %s27 = scalar_select %p26, 0, %s25
    %s28 = sadd.s32 1, %s19
    %s29 = scalar_select %p26, %s28, %s19
    %p30 = scmp.ge.s32.totalorder %s29, 1
    %s31 = scalar_select %p30, 0, %s29
    %s32 = ssub.s32 %s19, %s31
    %p33 = scmp.eq.s32.totalorder %s32, 0
    %s35 = sadd.s32 %s34, 1
    %s36 = scalar_select %p33, %s34, %s35
    %p39 = pneg %p33
    %p40 = scmp.eq.s32.totalorder %s12, 3
    %p41 = por %p39, %p40
    %p42 = scmp.ne.s32.totalorder %s34, %s37
    %p43 = scmp.eq.s32.totalorder %s12, 0
    %p44 = por %p42, %p43
    %p45 = scmp.ne.s32.totalorder %s34, %s37
    %p46 = scmp.eq.s32.totalorder %s17, 3
    %p47 = por %p45, %p46
    %p48 = scmp.ne.s32.totalorder %s37, %s38
    %p49 = scmp.eq.s32.totalorder %s17, 0
    %p50 = por %p48, %p49
    %p51 = scmp.ne.s32.totalorder %s37, %s38
    %p52 = scmp.eq.s32.totalorder %s18, 3
    %p53 = por %p51, %p52
    %p55 = scmp.ne.s32.totalorder %s38, %s54
    %p56 = scmp.eq.s32.totalorder %s18, 0
    %p57 = por %p55, %p56
    %s58 = ssub.s32 %s19, %s31
    %p59 = scmp.eq.s32.totalorder %s58, 0
    %s61 = sadd.s32 %s60, 1
    %s62 = scalar_select %p59, %s60, %s61
    %p65 = pneg %p59
    %p66 = scmp.eq.s32.totalorder %s12, 3
    %p67 = por %p65, %p66
    %p68 = scmp.ne.s32.totalorder %s60, %s63
    %p69 = scmp.eq.s32.totalorder %s12, 0
    %p70 = por %p68, %p69
    %p71 = scmp.ne.s32.totalorder %s60, %s63
    %p72 = scmp.eq.s32.totalorder %s17, 3
    %p73 = por %p71, %p72
    %p74 = scmp.ne.s32.totalorder %s63, %s64
    %p75 = scmp.eq.s32.totalorder %s17, 0
    %p76 = por %p74, %p75
    %p77 = scmp.ne.s32.totalorder %s63, %s64
    %p78 = scmp.eq.s32.totalorder %s18, 3
    %p79 = por %p77, %p78
    %p81 = scmp.ne.s32.totalorder %s64, %s80
    %p82 = scmp.eq.s32.totalorder %s18, 0
    %p83 = por %p81, %p82
    %s84 = ssub.s32 %s20, %s27
    %s85 = ssub.s32 %s19, %s31
    %s86 = sor.u32 %s84, %s85
    %p87 = scmp.eq.s32.totalorder %s86, 0
    %s89 = sadd.s32 %s88, 1
    %s90 = scalar_select %p87, %s88, %s89
    %p93 = pneg %p87
    %p94 = scmp.eq.s32.totalorder %s12, 3
    %p95 = por %p93, %p94
    %p96 = scmp.ne.s32.totalorder %s88, %s91
    %p97 = scmp.eq.s32.totalorder %s12, 0
    %p98 = por %p96, %p97
    %p99 = scmp.ne.s32.totalorder %s88, %s91
    %p100 = scmp.eq.s32.totalorder %s17, 3
    %p101 = por %p99, %p100
    %p102 = scmp.ne.s32.totalorder %s91, %s92
    %p103 = scmp.eq.s32.totalorder %s17, 0
    %p104 = por %p102, %p103
    %p105 = scmp.ne.s32.totalorder %s91, %s92
    %p106 = scmp.eq.s32.totalorder %s18, 3
    %p107 = por %p105, %p106
    %p109 = scmp.ne.s32.totalorder %s92, %s108
    %p110 = scmp.eq.s32.totalorder %s18, 0
    %p111 = por %p109, %p110
    %s112 = ssub.s32 %s20, %s27
    %s113 = ssub.s32 %s19, %s31
    %s114 = sor.u32 %s112, %s113
    %p115 = scmp.eq.s32.totalorder %s114, 0
    %s117 = sadd.s32 %s116, 1
    %s118 = scalar_select %p115, %s116, %s117
    %p121 = pneg %p115
    %p122 = scmp.eq.s32.totalorder %s12, 3
    %p123 = por %p121, %p122
    %p124 = scmp.ne.s32.totalorder %s116, %s119
    %p125 = scmp.eq.s32.totalorder %s12, 0
    %p126 = por %p124, %p125
    %p127 = scmp.ne.s32.totalorder %s116, %s119
    %p128 = scmp.eq.s32.totalorder %s17, 3
    %p129 = por %p127, %p128
    %p130 = scmp.ne.s32.totalorder %s119, %s120
    %p131 = scmp.eq.s32.totalorder %s17, 0
    %p132 = por %p130, %p131
    %p133 = scmp.ne.s32.totalorder %s119, %s120
    %p134 = scmp.eq.s32.totalorder %s18, 3
    %p135 = por %p133, %p134
    %p137 = scmp.ne.s32.totalorder %s120, %s136
    %p138 = scmp.eq.s32.totalorder %s18, 0
    %p139 = por %p137, %p138
    %s140 = ssub.s32 %s20, %s27
    %s141 = ssub.s32 %s19, %s31
    %s142 = sor.u32 %s140, %s141
    %p143 = scmp.eq.s32.totalorder %s142, 0
    %s145 = sadd.s32 %s144, 1
    %s146 = scalar_select %p143, %s144, %s145
    %p149 = pneg %p143
    %p150 = scmp.eq.s32.totalorder %s12, 3
    %p151 = por %p149, %p150
    %p152 = scmp.ne.s32.totalorder %s144, %s147
    %p153 = scmp.eq.s32.totalorder %s12, 0
    %p154 = por %p152, %p153
    %p155 = scmp.ne.s32.totalorder %s144, %s147
    %p156 = scmp.eq.s32.totalorder %s17, 3
    %p157 = por %p155, %p156
    %p158 = scmp.ne.s32.totalorder %s147, %s148
    %p159 = scmp.eq.s32.totalorder %s17, 0
    %p160 = por %p158, %p159
    %p161 = scmp.ne.s32.totalorder %s147, %s148
    %p162 = scmp.eq.s32.totalorder %s18, 3
    %p163 = por %p161, %p162
    %p165 = scmp.ne.s32.totalorder %s148, %s164
    %p166 = scmp.eq.s32.totalorder %s18, 0
    %p167 = por %p165, %p166
    %s168 = ssub.s32 %s20, %s27
    %s169 = ssub.s32 %s19, %s31
    %s170 = sor.u32 %s168, %s169
    %p171 = scmp.eq.s32.totalorder %s170, 0
    %s173 = sadd.s32 %s172, 1
    %s174 = scalar_select %p171, %s172, %s173
    %p177 = pneg %p171
    %p178 = scmp.eq.s32.totalorder %s12, 3
    %p179 = por %p177, %p178
    %p180 = scmp.ne.s32.totalorder %s172, %s175
    %p181 = scmp.eq.s32.totalorder %s12, 0
    %p182 = por %p180, %p181
    %p183 = scmp.ne.s32.totalorder %s172, %s175
    %p184 = scmp.eq.s32.totalorder %s17, 3
    %p185 = por %p183, %p184
    %p186 = scmp.ne.s32.totalorder %s175, %s176
    %p187 = scmp.eq.s32.totalorder %s17, 0
    %p188 = por %p186, %p187
    %p189 = scmp.ne.s32.totalorder %s175, %s176
    %p190 = scmp.eq.s32.totalorder %s18, 3
    %p191 = por %p189, %p190
    %p193 = scmp.ne.s32.totalorder %s176, %s192
    %p194 = scmp.eq.s32.totalorder %s18, 0
    %p195 = por %p193, %p194
    %p196 = scmp.le.s32.totalorder 1, %s12
    %p197 = scmp.lt.s32.totalorder %s12, 5
    %p198 = pnand %p196, %p197
    %p199 = pneg %p198
    // Predicated region
    $region9: #{phase_mask_forward.1} parent=5 // pred_check
      _
    $region10: #{phase_mask_forward.1} parent=5 // pred_check_branch
      %201 = sbr.rel (%p198) target = $region12
    $region11: #{phase_mask_forward.1} parent=5 // pred_region
      %s202 = ssub.s32 %s12, 1
      // Predicated region
      $region13: #{phase_mask_forward.1} parent=11 // pred_check
        %p203 = pneg %p50
      $region14: #{phase_mask_forward.1} parent=11 // pred_check_branch
        %205 = sbr.rel (%p203) target = $region16
      $region15: #{phase_mask_forward.1} parent=11 // pred_region
        %p206 = scmp.lt.s32.totalorder %s21, 0
        %s207 = scalar_select %p206, %s21, 0
        %s208 = smul.addr %s207, 4
        %s209 = smul.addr %s208, 8
        %s210 = scalar_lea.vmem %s0, %s209
      $region16: #{phase_mask_forward.1} parent=11 // pred_fallthru
        _
      // Predicated region
      $region17: #{phase_mask_forward.1} parent=11 // pred_check
        %p211 = pneg %p76
      $region18: #{phase_mask_forward.1} parent=11 // pred_check_branch
        %213 = sbr.rel (%p211) target = $region20
      $region19: #{phase_mask_forward.1} parent=11 // pred_region
        %p214 = scmp.lt.s32.totalorder %s21, 0
        %s215 = scalar_select %p214, %s21, 0
        %s216 = smul.addr %s215, 4
        %s217 = smul.addr %s216, 8
        %s218 = scalar_lea.vmem %s1, %s217
      $region20: #{phase_mask_forward.1} parent=11 // pred_fallthru
        _
    $region12: #{phase_mask_forward.1} parent=5 // pred_fallthru
      _
    %p219 = scmp.lt.s32.totalorder %s12, 4
    // Predicated region
    $region21: #{phase_mask_forward.1} parent=5 // pred_check
      %p220 = pneg %p219
    $region22: #{phase_mask_forward.1} parent=5 // pred_check_branch
      %222 = sbr.rel (%p220) target = $region24
    $region23: #{phase_mask_forward.1} parent=5 // pred_region
      // Predicated region
      $region25: #{phase_mask_forward.1} parent=23 // pred_check
        %p223 = pneg %p98
      $region26: #{phase_mask_forward.1} parent=23 // pred_check_branch
        %225 = sbr.rel (%p223) target = $region28
      $region27: #{phase_mask_forward.1} parent=23 // pred_region
        %p226 = scmp.lt.s32.totalorder %s20, 3
        %s227 = scalar_select %p226, %s20, 3
        %p228 = scmp.lt.s32.totalorder %s19, 0
        %s229 = scalar_select %p228, %s19, 0
        %s230 = smul.addr %s229, 4
        %s231 = smul.addr %s227, 4
        %s232 = sadd.s32 %s230, %s231
        %s233 = smul.addr %s232, 8
        %s234 = scalar_lea.vmem %s2, %s233
      $region28: #{phase_mask_forward.1} parent=23 // pred_fallthru
        _
      // Predicated region
      $region29: #{phase_mask_forward.1} parent=23 // pred_check
        %p235 = pneg %p126
      $region30: #{phase_mask_forward.1} parent=23 // pred_check_branch
        %237 = sbr.rel (%p235) target = $region32
      $region31: #{phase_mask_forward.1} parent=23 // pred_region
        %p238 = scmp.lt.s32.totalorder %s20, 3
        %s239 = scalar_select %p238, %s20, 3
        %p240 = scmp.lt.s32.totalorder %s19, 0
        %s241 = scalar_select %p240, %s19, 0
        %s242 = smul.addr %s241, 4
        %s243 = smul.addr %s239, 4
        %s244 = sadd.s32 %s242, %s243
        %s245 = smul.addr %s244, 8
        %s246 = scalar_lea.vmem %s3, %s245
      $region32: #{phase_mask_forward.1} parent=23 // pred_fallthru
        _
    $region24: #{phase_mask_forward.1} parent=5 // pred_fallthru
      _
    %p247 = scmp.le.s32.totalorder 1, %s12
    %p248 = scmp.lt.s32.totalorder %s12, 5
    %p249 = pnand %p247, %p248
    %p250 = pneg %p249
    // Predicated region
    $region33: #{phase_mask_forward.1} parent=5 // pred_check
      _
    $region34: #{phase_mask_forward.1} parent=5 // pred_check_branch
      %252 = sbr.rel (%p249) target = $region36
    $region35: #{phase_mask_forward.1} parent=5 // pred_region
      %s253 = ssub.s32 %s12, 1
      %p254 = scmp.lt.s32.totalorder %s21, 0
      %s255 = scalar_select %p254, %s21, 0
      %s256 = smul.addr %s255, 4
      %s257 = smul.addr %s256, 8
      %s258 = scalar_lea.vmem %s0, %s257
      %p259 = pneg %p50
      %p260 = pneg %p47
      %p261 = scmp.lt.s32.totalorder %s21, 0
      %s262 = scalar_select %p261, %s21, 0
      %s263 = smul.addr %s262, 4
      %s264 = smul.addr %s263, 8
      %s265 = scalar_lea.vmem %s1, %s264
      %p266 = pneg %p76
      %p267 = pneg %p73
      %p268 = scmp.lt.s32.totalorder %s22, 3
      %s269 = scalar_select %p268, %s22, 3
      %p270 = scmp.lt.s32.totalorder %s21, 0
      %s271 = scalar_select %p270, %s21, 0
      %s272 = smul.addr %s271, 4
      %s273 = smul.addr %s269, 4
      %s274 = sadd.s32 %s272, %s273
      %s275 = smul.addr %s274, 8
      %s276 = scalar_lea.vmem %s2, %s275
      %p277 = pneg %p104
      %p278 = pneg %p101
      %p279 = scmp.lt.s32.totalorder %s22, 3
      %s280 = scalar_select %p279, %s22, 3
      %p281 = scmp.lt.s32.totalorder %s21, 0
      %s282 = scalar_select %p281, %s21, 0
      %s283 = smul.addr %s282, 4
      %s284 = smul.addr %s280, 4
      %s285 = sadd.s32 %s283, %s284
      %s286 = smul.addr %s285, 8
      %s287 = scalar_lea.vmem %s3, %s286
      %p288 = pneg %p132
      %p289 = pneg %p129
      %p290 = pneg %p160
      %p291 = pneg %p157
      %p292 = scmp.lt.s32.totalorder %s22, 3
      %s293 = scalar_select %p292, %s22, 3
      %p294 = scmp.lt.s32.totalorder %s21, 0
      %s295 = scalar_select %p294, %s21, 0
      %s296 = smul.addr %s295, 4
      %s297 = smul.addr %s293, 4
      %s298 = sadd.s32 %s296, %s297
      %s299 = smul.addr %s298, 8
      %s300 = scalar_lea.vmem %s4, %s299
      %p301 = pneg %p188
      %p302 = pneg %p185
      %p303 = scmp.lt.s32.totalorder %s22, 3
      %s304 = scalar_select %p303, %s22, 3
      %p305 = scmp.lt.s32.totalorder %s21, 0
      %s306 = scalar_select %p305, %s21, 0
      %s307 = smul.addr %s306, 4
      %s308 = smul.addr %s304, 4
      %s309 = sadd.s32 %s307, %s308
      %s310 = smul.addr %s309, 8
      %s311 = scalar_lea.vmem %s5, %s310
      %p312 = scmp.lt.s32.totalorder %s21, 0
      %s313 = scalar_select %p312, %s21, 0
      %s314 = smul.addr %s313, 4
      %s315 = smul.addr %s314, 8
      %s316 = scalar_lea.vmem %s0, %s315
      %p317 = scmp.lt.s32.totalorder %s21, 0
      %s318 = scalar_select %p317, %s21, 0
      %s319 = smul.addr %s318, 4
      %s320 = smul.addr %s319, 8
      %s321 = scalar_lea.vmem %s1, %s320
      %p322 = scmp.lt.s32.totalorder %s22, 3
      %s323 = scalar_select %p322, %s22, 3
      %p324 = scmp.lt.s32.totalorder %s21, 0
      %s325 = scalar_select %p324, %s21, 0
      %s326 = smul.addr %s325, 4
      %s327 = smul.addr %s323, 4
      %s328 = sadd.s32 %s326, %s327
      %s329 = smul.addr %s328, 8
      %s330 = scalar_lea.vmem %s2, %s329
      %p331 = scmp.lt.s32.totalorder %s22, 3
      %s332 = scalar_select %p331, %s22, 3
      %p333 = scmp.lt.s32.totalorder %s21, 0
      %s334 = scalar_select %p333, %s21, 0
      %s335 = smul.addr %s334, 4
      %s336 = smul.addr %s332, 4
      %s337 = sadd.s32 %s335, %s336
      %s338 = smul.addr %s337, 8
      %s339 = scalar_lea.vmem %s3, %s338
      %p340 = scmp.lt.s32.totalorder %s22, 3
      %s341 = scalar_select %p340, %s22, 3
      %p342 = scmp.lt.s32.totalorder %s21, 0
      %s343 = scalar_select %p342, %s21, 0
      %s344 = smul.addr %s343, 4
      %s345 = smul.addr %s341, 4
      %s346 = sadd.s32 %s344, %s345
      %s347 = smul.addr %s346, 8
      %s348 = scalar_lea.vmem %s4, %s347
      %p349 = scmp.lt.s32.totalorder %s22, 3
      %s350 = scalar_select %p349, %s22, 3
      %p351 = scmp.lt.s32.totalorder %s21, 0
      %s352 = scalar_select %p351, %s21, 0
      %s353 = smul.addr %s352, 4
      %s354 = smul.addr %s350, 4
      %s355 = sadd.s32 %s353, %s354
      %s356 = smul.addr %s355, 8
      %s357 = scalar_lea.vmem %s5, %s356
      %v358 = vld [vmem:[%s316] sm:$0xff]
      %v359 = vld [vmem:[%s316 + $0x8] sm:$0xff]
      %v360 = vld [vmem:[%s316 + $0x10] sm:$0xff]
      %v361 = vld [vmem:[%s316 + $0x18] sm:$0xff]
      %v362 = vld [vmem:[%s321] sm:$0xff]
      %v363 = vld [vmem:[%s321 + $0x8] sm:$0xff]
      %v364 = vld [vmem:[%s321 + $0x10] sm:$0xff]
      %v365 = vld [vmem:[%s321 + $0x18] sm:$0xff]
      %v366 = vld [vmem:[%s330] sm:$0xff]
      %v367 = vld [vmem:[%s330 + $0x8] sm:$0xff]
      %v368 = vld [vmem:[%s330 + $0x10] sm:$0xff]
      %v369 = vld [vmem:[%s330 + $0x18] sm:$0xff]
      %v370 = vld [vmem:[%s339] sm:$0xff]
      %v371 = vld [vmem:[%s339 + $0x8] sm:$0xff]
      %v372 = vld [vmem:[%s339 + $0x10] sm:$0xff]
      %v373 = vld [vmem:[%s339 + $0x18] sm:$0xff]
      %v374 = vmul.f32 %v366, %v358
      %v375 = vmul.f32 %v367, %v359
      %v376 = vmul.f32 %v368, %v360
      %v377 = vmul.f32 %v369, %v361
      %v378 = vmul.f32 %v370, %v362
      %v379 = vmul.f32 %v371, %v363
      %v380 = vmul.f32 %v372, %v364
      %v381 = vmul.f32 %v373, %v365
      %v382 = vsub.f32 %v374, %v378
      %v383 = vsub.f32 %v375, %v379
      %v384 = vsub.f32 %v376, %v380
      %v385 = vsub.f32 %v377, %v381
      %386 = vst [vmem:[%s348] sm:$0xff] %v382
      %387 = vst [vmem:[%s348 + $0x8] sm:$0xff] %v383
      %388 = vst [vmem:[%s348 + $0x10] sm:$0xff] %v384
      %389 = vst [vmem:[%s348 + $0x18] sm:$0xff] %v385
      %v390 = vmul.f32 %v366, %v362
      %v391 = vmul.f32 %v367, %v363
      %v392 = vmul.f32 %v368, %v364
      %v393 = vmul.f32 %v369, %v365
      %v394 = vmul.f32 %v370, %v358
      %v395 = vmul.f32 %v371, %v359
      %v396 = vmul.f32 %v372, %v360
      %v397 = vmul.f32 %v373, %v361
      %v398 = vadd.f32 %v390, %v394
      %v399 = vadd.f32 %v391, %v395
      %v400 = vadd.f32 %v392, %v396
      %v401 = vadd.f32 %v393, %v397
      %402 = vst [vmem:[%s357] sm:$0xff] %v398
      %403 = vst [vmem:[%s357 + $0x8] sm:$0xff] %v399
      %404 = vst [vmem:[%s357 + $0x10] sm:$0xff] %v400
      %405 = vst [vmem:[%s357 + $0x18] sm:$0xff] %v401
      %p406 = scmp.lt.s32.totalorder %s22, 3
      %s407 = scalar_select %p406, %s22, 3
      %p408 = scmp.lt.s32.totalorder %s21, 0
      %s409 = scalar_select %p408, %s21, 0
      %s410 = smul.addr %s409, 4
      %s411 = smul.addr %s407, 4
      %s412 = sadd.s32 %s410, %s411
      %s413 = smul.addr %s412, 8
      %s414 = scalar_lea.vmem %s4, %s413
      %p415 = scmp.lt.s32.totalorder %s22, 3
      %s416 = scalar_select %p415, %s22, 3
      %p417 = scmp.lt.s32.totalorder %s21, 0
      %s418 = scalar_select %p417, %s21, 0
      %s419 = smul.addr %s418, 4
      %s420 = smul.addr %s416, 4
      %s421 = sadd.s32 %s419, %s420
      %s422 = smul.addr %s421, 8
      %s423 = scalar_lea.vmem %s5, %s422
      // Predicated region
      $region37: #{phase_mask_forward.1} parent=35 // pred_check
        %p424 = pneg %p157
      $region38: #{phase_mask_forward.1} parent=35 // pred_check_branch
        %426 = sbr.rel (%p424) target = $region40
      $region39: #{phase_mask_forward.1} parent=35 // pred_region
        _
      $region40: #{phase_mask_forward.1} parent=35 // pred_fallthru
        _
      // Predicated region
      $region41: #{phase_mask_forward.1} parent=35 // pred_check
        %p427 = pneg %p185
      $region42: #{phase_mask_forward.1} parent=35 // pred_check_branch
        %429 = sbr.rel (%p427) target = $region44
      $region43: #{phase_mask_forward.1} parent=35 // pred_region
        _
      $region44: #{phase_mask_forward.1} parent=35 // pred_fallthru
        _
    $region36: #{phase_mask_forward.1} parent=5 // pred_fallthru
      _
    %p430 = scmp.le.s32.totalorder 2, %s12
    // Predicated region
    $region45: #{phase_mask_forward.1} parent=5 // pred_check
      %p431 = pneg %p430
    $region46: #{phase_mask_forward.1} parent=5 // pred_check_branch
      %433 = sbr.rel (%p431) target = $region48
    $region47: #{phase_mask_forward.1} parent=5 // pred_region
      %s434 = ssub.s32 %s12, 2
      // Predicated region
      $region49: #{phase_mask_forward.1} parent=47 // pred_check
        %p435 = pneg %p163
      $region50: #{phase_mask_forward.1} parent=47 // pred_check_branch
        %437 = sbr.rel (%p435) target = $region52
      $region51: #{phase_mask_forward.1} parent=47 // pred_region
        %p438 = scmp.lt.s32.totalorder %s24, 3
        %s439 = scalar_select %p438, %s24, 3
        %p440 = scmp.lt.s32.totalorder %s23, 0
        %s441 = scalar_select %p440, %s23, 0
        %s442 = smul.addr %s441, 4
        %s443 = smul.addr %s439, 4
        %s444 = sadd.s32 %s442, %s443
        %s445 = smul.addr %s444, 8
        %s446 = scalar_lea.vmem %s4, %s445
      $region52: #{phase_mask_forward.1} parent=47 // pred_fallthru
        _
      // Predicated region
      $region53: #{phase_mask_forward.1} parent=47 // pred_check
        %p447 = pneg %p191
      $region54: #{phase_mask_forward.1} parent=47 // pred_check_branch
        %449 = sbr.rel (%p447) target = $region56
      $region55: #{phase_mask_forward.1} parent=47 // pred_region
        %p450 = scmp.lt.s32.totalorder %s24, 3
        %s451 = scalar_select %p450, %s24, 3
        %p452 = scmp.lt.s32.totalorder %s23, 0
        %s453 = scalar_select %p452, %s23, 0
        %s454 = smul.addr %s453, 4
        %s455 = smul.addr %s451, 4
        %s456 = sadd.s32 %s454, %s455
        %s457 = smul.addr %s456, 8
        %s458 = scalar_lea.vmem %s5, %s457
      $region56: #{phase_mask_forward.1} parent=47 // pred_fallthru
        _
    $region48: #{phase_mask_forward.1} parent=5 // pred_fallthru
      _
  $region6: #{phase_mask_forward.1} parent=0 // loop_footer
    %s16 = sadd.s32 1, %s12
  $region7: #{phase_mask_forward.1} parent=0 // loop_footer_branch
    %11 = sbr.rel target = $region3
  $region8: #{phase_mask_forward.1} parent=0 // loop_exit
    _

</llo_original>
